<compile_context>
chip_gen: v6e
topology: v6e:2x2x1
jax: 0.10.0
libtpu: 0.0.40
codegen_flags: <defaults>
</compile_context>

<pallas_src>
import functools

import jax
import jax.numpy as jnp
from jax.experimental import pallas as pl
from jax.experimental.pallas import tpu as pltpu

# TODO(synk): `self.negative_slope` is never defined in the PyTorch module's
# __init__ (the original forward would raise AttributeError); we pin it to the
# nn.LeakyReLU default of 0.01.  Since the slope is >= 0, leaky_relu followed
# by relu collapses exactly to a single ReLU, which is what the kernel
# computes (reference_forward keeps the two-step form to verify).
NEGATIVE_SLOPE = 0.01
C_OUT = 8
KH = KW = 3


def conv_relu_kernel(x_ref, wb_ref, o_ref, *, wp, lpad):
    """Per-image 3x3 conv (C_in=1) + bias + ReLU on a padded-flat layout.

    x_ref:  (1, 1, lpad)  f32 -- this batch element's zero-padded image,
            flattened row-major onto the lane axis (lpad multiple of 128).
    wb_ref: (C_OUT, 16)   f32 -- lanes 0..8 = 3x3 weights (row-major taps),
            lane 9 = bias, rest zero.
    o_ref:  (1, C_OUT, lpad) f32 -- output in the same padded-flat layout;
            padding-ring / tail lanes hold garbage and are cropped outside.
    """
    # One sublane broadcast instead of an 8x-replicated HBM input.
    xv = jnp.broadcast_to(x_ref[0], (C_OUT, lpad))       # (C_OUT, lpad)
    wb = wb_ref[...]                                      # (C_OUT, 16)

    # Column taps: output flat index i reads input flat index i + (kw - 1).
    x_l = pltpu.roll(xv, 1, axis=1)                       # x_l[j] = x[j - 1] (kw=0)
    x_r = pltpu.roll(xv, lpad - 1, axis=1)                # x_r[j] = x[j + 1] (kw=2)

    def row_combo(kh):                                    # VALU only
        k = kh * KW
        return (wb[:, k:k + 1] * x_l
                + wb[:, k + 1:k + 2] * xv
                + wb[:, k + 2:k + 3] * x_r)

    s0, s1, s2 = row_combo(0), row_combo(1), row_combo(2)

    # Row taps: output i reads row-combo at i + (kh - 1) * wp.
    acc = pltpu.roll(s0, wp, axis=1) + s1 + pltpu.roll(s2, lpad - wp, axis=1)

    bias = wb[:, KH * KW:KH * KW + 1]                     # (C_OUT, 1)
    # leaky_relu (slope >= 0) followed by relu == relu (single VALU max).
    o_ref[0] = jnp.maximum(acc + bias, 0.0).astype(o_ref.dtype)


def model_forward(x, weight, bias):
    """x: (N, 1, H, W) f32; weight: (8, 1, 3, 3); bias: (8,). Returns NCHW."""
    N, C_in, H, W = x.shape
    assert C_in == 1
    Hp, Wp = H + 2, W + 2
    img = Hp * Wp
    lpad = ((img + 127) // 128) * 128                     # lane-dense per image

    # Circular-roll wrap safety: reads for valid output positions stay inside
    # [0, img) per image, so wrapped lanes only hit padding-ring/tail lanes
    # that are cropped below.
    assert Wp + 1 >= 0 and (img - Wp - 2) + (Wp + 1) < lpad
    assert NEGATIVE_SLOPE >= 0.0  # required for the leaky_relu->relu collapse

    # Layout plumbing: spatial zero-pad, flatten each image onto the lane
    # axis, zero-pad the tail to a multiple of 128.  No 8x replication.
    xp = jnp.pad(x[:, 0], ((0, 0), (1, 1), (1, 1)))                  # (N,Hp,Wp)
    xflat = jnp.pad(xp.reshape(N, 1, img),
                    ((0, 0), (0, 0), (0, lpad - img)))               # (N,1,lpad)

    # Pack weights (9 taps) and bias into one small operand (one DMA).
    wb = jnp.concatenate(
        [weight[:, 0].reshape(C_OUT, KH * KW).astype(jnp.float32),
         bias.reshape(C_OUT, 1).astype(jnp.float32),
         jnp.zeros((C_OUT, 6), jnp.float32)], axis=1)                # (8,16)

    kernel = functools.partial(conv_relu_kernel, wp=Wp, lpad=lpad)
    out_flat = pl.pallas_call(
        kernel,
        out_shape=jax.ShapeDtypeStruct((N, C_OUT, lpad), jnp.float32),
        grid_spec=pltpu.PrefetchScalarGridSpec(
            num_scalar_prefetch=0,
            grid=(N,),                                    # parallel over batch
            in_specs=[
                pl.BlockSpec((1, 1, lpad), lambda n: (n, 0, 0)),
                pl.BlockSpec((C_OUT, 16), lambda n: (0, 0)),
            ],
            out_specs=pl.BlockSpec((1, C_OUT, lpad), lambda n: (n, 0, 0)),
        ),
        compiler_params=pltpu.CompilerParams(
            dimension_semantics=("parallel",)),
    )(xflat, wb)

    # Undo the padded-flat layout: contiguous slice + reshape + crop.
    # Output is already channel-after-batch (N, C_OUT, H, W): no transpose.
    out = out_flat[:, :, :img].reshape(N, C_OUT, Hp, Wp)[:, :, 1:1 + H, 1:1 + W]
    return out.astype(x.dtype)


def reference_forward(x, weight, bias):
    v1 = jax.lax.conv_general_dilated(
        x, weight, window_strides=(1, 1), padding="SAME",
        dimension_numbers=("NCHW", "OIHW", "NCHW"))
    v1 = v1 + bias.reshape(1, C_OUT, 1, 1)
    v4 = jnp.where(v1 > 0, v1, v1 * NEGATIVE_SLOPE)
    return jnp.maximum(v4, 0.0)


if __name__ == "__main__":
    key = jax.random.PRNGKey(0)
    kx, kw, kb = jax.random.split(key, 3)

    N, H, W = 2, 16, 16
    x = jax.random.normal(kx, (N, 1, H, W), dtype=jnp.float32)
    # Deterministic parameter init (same shapes as nn.Conv2d(1, 8, 3)).
    weight = jax.random.normal(kw, (C_OUT, 1, KH, KW), dtype=jnp.float32) * 0.1
    bias = jax.random.normal(kb, (C_OUT,), dtype=jnp.float32) * 0.1

    out = jax.block_until_ready(model_forward(x, weight, bias))

    ref = reference_forward(x, weight, bias)
    assert out.shape == (N, C_OUT, H, W)
    assert jnp.allclose(out, ref, atol=1e-4, rtol=1e-4)

    print("KERNEL_OK")
</pallas_src>

<mosaic_0001>
module attributes {stable_mosaic.version = 11 : i64} {
  func.func @conv_relu_kernel(%arg0: i32, %arg1: memref<1x1x384xf32, #tpu.memory_space<vmem>>, %arg2: memref<8x16xf32, #tpu.memory_space<vmem>>, %arg3: memref<1x8x384xf32, #tpu.memory_space<vmem>>) attributes {dimension_semantics = [#tpu.dimension_semantics<parallel>], iteration_bounds = array<i64: 2>, scalar_prefetch = 0 : i64, scratch_operands = 0 : i64, tpu.core_type = #tpu.core_type<tc>, window_params = [{transform_indices = @transform_0, window_bounds = array<i64: 1, 1, 384>}, {pipeline_mode = #tpu.pipeline_mode<synchronous>, transform_indices = @transform_1, window_bounds = array<i64: 8, 16>}, {transform_indices = @transform_2, window_bounds = array<i64: 1, 8, 384>}]} {
    %c0 = arith.constant 0 : index
    %c0_0 = arith.constant 0 : index
    %c0_1 = arith.constant 0 : index
    %0 = vector.load %arg1[%c0, %c0_0, %c0_1] : memref<1x1x384xf32, #tpu.memory_space<vmem>>, vector<1x1x384xf32>
    %1 = vector.shape_cast %0 : vector<1x1x384xf32> to vector<1x384xf32>
    %2 = vector.shape_cast %1 : vector<1x384xf32> to vector<1x384xf32>
    %3 = vector.broadcast %2 : vector<1x384xf32> to vector<8x384xf32>
    %c0_2 = arith.constant 0 : index
    %c0_3 = arith.constant 0 : index
    %4 = vector.load %arg2[%c0_2, %c0_3] : memref<8x16xf32, #tpu.memory_space<vmem>>, vector<8x16xf32>
    %c1_i32 = arith.constant 1 : i32
    %5 = tpu.dynamic_rotate %3 by %c1_i32 dim 1 : vector<8x384xf32>, i32 -> vector<8x384xf32>
    %c383_i32 = arith.constant 383 : i32
    %6 = tpu.dynamic_rotate %3 by %c383_i32 dim 1 : vector<8x384xf32>, i32 -> vector<8x384xf32>
    %7 = vector.extract_strided_slice %4 {offsets = [0, 0], sizes = [8, 1], strides = [1, 1]} : vector<8x16xf32> to vector<8x1xf32>
    %8 = vector.broadcast %7 : vector<8x1xf32> to vector<8x384xf32>
    %9 = arith.mulf %8, %5 : vector<8x384xf32>
    %10 = vector.extract_strided_slice %4 {offsets = [0, 1], sizes = [8, 1], strides = [1, 1]} : vector<8x16xf32> to vector<8x1xf32>
    %11 = vector.broadcast %10 : vector<8x1xf32> to vector<8x384xf32>
    %12 = arith.mulf %11, %3 : vector<8x384xf32>
    %13 = arith.addf %9, %12 : vector<8x384xf32>
    %14 = vector.extract_strided_slice %4 {offsets = [0, 2], sizes = [8, 1], strides = [1, 1]} : vector<8x16xf32> to vector<8x1xf32>
    %15 = vector.broadcast %14 : vector<8x1xf32> to vector<8x384xf32>
    %16 = arith.mulf %15, %6 : vector<8x384xf32>
    %17 = arith.addf %13, %16 : vector<8x384xf32>
    %18 = vector.extract_strided_slice %4 {offsets = [0, 3], sizes = [8, 1], strides = [1, 1]} : vector<8x16xf32> to vector<8x1xf32>
    %19 = vector.broadcast %18 : vector<8x1xf32> to vector<8x384xf32>
    %20 = arith.mulf %19, %5 : vector<8x384xf32>
    %21 = vector.extract_strided_slice %4 {offsets = [0, 4], sizes = [8, 1], strides = [1, 1]} : vector<8x16xf32> to vector<8x1xf32>
    %22 = vector.broadcast %21 : vector<8x1xf32> to vector<8x384xf32>
    %23 = arith.mulf %22, %3 : vector<8x384xf32>
    %24 = arith.addf %20, %23 : vector<8x384xf32>
    %25 = vector.extract_strided_slice %4 {offsets = [0, 5], sizes = [8, 1], strides = [1, 1]} : vector<8x16xf32> to vector<8x1xf32>
    %26 = vector.broadcast %25 : vector<8x1xf32> to vector<8x384xf32>
    %27 = arith.mulf %26, %6 : vector<8x384xf32>
    %28 = arith.addf %24, %27 : vector<8x384xf32>
    %29 = vector.extract_strided_slice %4 {offsets = [0, 6], sizes = [8, 1], strides = [1, 1]} : vector<8x16xf32> to vector<8x1xf32>
    %30 = vector.broadcast %29 : vector<8x1xf32> to vector<8x384xf32>
    %31 = arith.mulf %30, %5 : vector<8x384xf32>
    %32 = vector.extract_strided_slice %4 {offsets = [0, 7], sizes = [8, 1], strides = [1, 1]} : vector<8x16xf32> to vector<8x1xf32>
    %33 = vector.broadcast %32 : vector<8x1xf32> to vector<8x384xf32>
    %34 = arith.mulf %33, %3 : vector<8x384xf32>
    %35 = arith.addf %31, %34 : vector<8x384xf32>
    %36 = vector.extract_strided_slice %4 {offsets = [0, 8], sizes = [8, 1], strides = [1, 1]} : vector<8x16xf32> to vector<8x1xf32>
    %37 = vector.broadcast %36 : vector<8x1xf32> to vector<8x384xf32>
    %38 = arith.mulf %37, %6 : vector<8x384xf32>
    %39 = arith.addf %35, %38 : vector<8x384xf32>
    %c18_i32 = arith.constant 18 : i32
    %40 = tpu.dynamic_rotate %17 by %c18_i32 dim 1 : vector<8x384xf32>, i32 -> vector<8x384xf32>
    %41 = arith.addf %40, %28 : vector<8x384xf32>
    %c366_i32 = arith.constant 366 : i32
    %42 = tpu.dynamic_rotate %39 by %c366_i32 dim 1 : vector<8x384xf32>, i32 -> vector<8x384xf32>
    %43 = arith.addf %41, %42 : vector<8x384xf32>
    %44 = vector.extract_strided_slice %4 {offsets = [0, 9], sizes = [8, 1], strides = [1, 1]} : vector<8x16xf32> to vector<8x1xf32>
    %45 = vector.broadcast %44 : vector<8x1xf32> to vector<8x384xf32>
    %46 = arith.addf %43, %45 : vector<8x384xf32>
    %cst = arith.constant 0.000000e+00 : f32
    %47 = vector.broadcast %cst : f32 to vector<8x384xf32>
    %48 = arith.maximumf %46, %47 : vector<8x384xf32>
    %c0_4 = arith.constant 0 : index
    %c0_5 = arith.constant 0 : index
    %c0_6 = arith.constant 0 : index
    %49 = vector.load %arg3[%c0_4, %c0_5, %c0_6] : memref<1x8x384xf32, #tpu.memory_space<vmem>>, vector<1x8x384xf32>
    %50 = vector.shape_cast %49 : vector<1x8x384xf32> to vector<8x384xf32>
    %51 = vector.shape_cast %48 : vector<8x384xf32> to vector<1x8x384xf32>
    tpu.vector_store %arg3[%c0_4, %c0_5, %c0_6], %51 {strides = array<i32>} : memref<1x8x384xf32, #tpu.memory_space<vmem>>, vector<1x8x384xf32>,
    return
  }
  func.func @transform_0(%arg0: i32) -> (i32, i32, i32) {
    %c0_i32 = arith.constant 0 : i32
    %c0_i32_0 = arith.constant 0 : i32
    %c0_i32_1 = arith.constant 0 : i32
    return %arg0, %c0_i32, %c0_i32_0 : i32, i32, i32
  }
  func.func @transform_1(%arg0: i32) -> (i32, i32) {
    %c0_i32 = arith.constant 0 : i32
    %c0_i32_0 = arith.constant 0 : i32
    %c0_i32_1 = arith.constant 0 : i32
    return %c0_i32, %c0_i32_0 : i32, i32
  }
  func.func @transform_2(%arg0: i32) -> (i32, i32, i32) {
    %c0_i32 = arith.constant 0 : i32
    %c0_i32_0 = arith.constant 0 : i32
    %c0_i32_1 = arith.constant 0 : i32
    return %arg0, %c0_i32, %c0_i32_0 : i32, i32, i32
  }
}

</mosaic_0001>

<llo_original>
// kernel: tpu_custom_call.1
$region0: #{tpu_custom_call.1}
  #allocation0 [shape = 'u32[]', space=smem, size = 0x4, offset = 0x4, fixed_abs, tag = 'smem constant byte address 0x4 - core index']
  #allocation1 [shape = 'u32[144,128]{1,0:T(1,128)}', space=vmem, size = 0x12000, scoped, tag = 'internal scratch']
  %s0 = inlined_call_operand.hbm [shape: f32[2,1,384], index: 0, kind: input, shape index: {}]
  %s1 = inlined_call_operand.hbm [shape: f32[8,16], index: 1, kind: input, shape index: {}]
  %s2 = inlined_call_operand.hbm [shape: f32[2,8,384], index: 2, kind: output, shape index: {}]
  %s3 = sld [smem:[#allocation0]]
  $region49: #{tpu_custom_call.1} parent=0
    _
  %s5 = ssub.s32 1, %s3
  %s6 = scalar_select 0, %s5, %s3
  $region1: #{tpu_custom_call.1} parent=0
    #allocation2 [shape = 'u8[3072]{0}', space=vmem, size = 0xc00, scoped, tag = 'input window, operand 0']
    #allocation3 [shape = 's32[2]{0}', space=sflag, size = 0x8, scoped, tag = 'scoped memory for tpu_custom_call.1']
    #allocation4 [shape = 's32[2]{0}', space=sflag, size = 0x8, scoped, tag = 'scoped memory for tpu_custom_call.1']
    #allocation5 [shape = 'u8[4096]{0}', space=vmem, size = 0x1000, scoped, tag = 'input window, operand 1, single buffered']
    #allocation6 [shape = 's32[1]{0}', space=sflag, size = 0x4, scoped, tag = 'scoped memory for tpu_custom_call.1']
    #allocation7 [shape = 'u8[24576]{0}', space=vmem, size = 0x6000, scoped, tag = 'output window, operand 0']
    %7 = vsyncpa [#allocation3], 0
    %s8 = scalar_lea.sflag [#allocation3], 1
    %9 = vsyncpa %s8, 0
    %10 = vsyncpa [#allocation6], 0
    %11 = vsyncpa [#allocation4], 0
    %s12 = scalar_lea.sflag [#allocation4], 1
    %13 = vsyncpa %s12, 0
    loop: start=0, step=1, limit=4
    $region2: #{tpu_custom_call.1} parent=1 // loop_pre_header
      _
    $region3: #{tpu_custom_call.1} parent=1 // loop_header
      %s15 = sphi 0, %s19
      %p16 = scmp.ge.s32.totalorder %s15, 4
      %s25 = sphi 0, %s27
      %s28 = sphi 0, %s25
      %s29 = sphi 0, %s28
      %s45 = sphi 0, %s29
      %s49 = sphi 0, %s49
      %s51 = sphi 0, %s49
      %s52 = sphi 0, %s51
      %s66 = sphi 0, %s52
      %s72 = sphi 0, %s74
      %s75 = sphi 0, %s72
      %s76 = sphi 0, %s75
      %s92 = sphi 0, %s76
    $region4: #{tpu_custom_call.1} parent=1 // loop_header_branch
      %18 = sbr.rel (%p16) target = $region8
    $region5: #{tpu_custom_call.1} parent=1 // loop_body
      %s20 = ssub.s32 %s15, 1
      %s21 = ssub.s32 %s15, 2
      %s22 = sadd.s32 %s15, 1
      %s23 = ssub.s32 %s15, %s22
      %p24 = scmp.eq.s32.totalorder %s23, 0
      %s26 = sadd.s32 %s25, 1
      %s27 = scalar_select %p24, %s25, %s26
      %p30 = pneg %p24
      %p31 = scmp.eq.s32.totalorder %s15, 1
      %p32 = por %p30, %p31
      %p33 = scmp.ne.s32.totalorder %s25, %s28
      %p34 = scmp.eq.s32.totalorder %s15, 0
      %p35 = por %p33, %p34
      %p36 = scmp.ne.s32.totalorder %s25, %s28
      %p37 = scmp.eq.s32.totalorder %s20, 1
      %p38 = por %p36, %p37
      %p39 = scmp.ne.s32.totalorder %s28, %s29
      %p40 = scmp.eq.s32.totalorder %s20, 0
      %p41 = por %p39, %p40
      %p42 = scmp.ne.s32.totalorder %s28, %s29
      %p43 = scmp.eq.s32.totalorder %s21, 1
      %p44 = por %p42, %p43
      %p46 = scmp.ne.s32.totalorder %s29, %s45
      %p47 = scmp.eq.s32.totalorder %s21, 0
      %p48 = por %p46, %p47
      %s50 = sadd.s32 %s49, 1
      %p53 = scmp.eq.s32.totalorder %s15, 1
      %p54 = scmp.ne.s32.totalorder %s49, %s51
      %p55 = scmp.eq.s32.totalorder %s15, 0
      %p56 = por %p54, %p55
      %p57 = scmp.ne.s32.totalorder %s49, %s51
      %p58 = scmp.eq.s32.totalorder %s20, 1
      %p59 = por %p57, %p58
      %p60 = scmp.ne.s32.totalorder %s51, %s52
      %p61 = scmp.eq.s32.totalorder %s20, 0
      %p62 = por %p60, %p61
      %p63 = scmp.ne.s32.totalorder %s51, %s52
      %p64 = scmp.eq.s32.totalorder %s21, 1
      %p65 = por %p63, %p64
      %p67 = scmp.ne.s32.totalorder %s52, %s66
      %p68 = scmp.eq.s32.totalorder %s21, 0
      %p69 = por %p67, %p68
      %s70 = ssub.s32 %s15, %s22
      %p71 = scmp.eq.s32.totalorder %s70, 0
      %s73 = sadd.s32 %s72, 1
      %s74 = scalar_select %p71, %s72, %s73
      %p77 = pneg %p71
      %p78 = scmp.eq.s32.totalorder %s15, 1
      %p79 = por %p77, %p78
      %p80 = scmp.ne.s32.totalorder %s72, %s75
      %p81 = scmp.eq.s32.totalorder %s15, 0
      %p82 = por %p80, %p81
      %p83 = scmp.ne.s32.totalorder %s72, %s75
      %p84 = scmp.eq.s32.totalorder %s20, 1
      %p85 = por %p83, %p84
      %p86 = scmp.ne.s32.totalorder %s75, %s76
      %p87 = scmp.eq.s32.totalorder %s20, 0
      %p88 = por %p86, %p87
      %p89 = scmp.ne.s32.totalorder %s75, %s76
      %p90 = scmp.eq.s32.totalorder %s21, 1
      %p91 = por %p89, %p90
      %p93 = scmp.ne.s32.totalorder %s76, %s92
      %p94 = scmp.eq.s32.totalorder %s21, 0
      %p95 = por %p93, %p94
      %p96 = scmp.le.s32.totalorder 1, %s15
      %p97 = scmp.lt.s32.totalorder %s15, 3
      %p98 = pnand %p96, %p97
      %p99 = pneg %p98
      // Predicated region
      $region9: #{tpu_custom_call.1} parent=5 // pred_check
        _
      $region10: #{tpu_custom_call.1} parent=5 // pred_check_branch
        %101 = sbr.rel (%p98) target = $region12
      $region11: #{tpu_custom_call.1} parent=5 // pred_region
        %s102 = ssub.s32 %s15, 1
        // Predicated region
        $region13: #{tpu_custom_call.1} parent=11 // pred_check
          %p103 = pneg %p62
        $region14: #{tpu_custom_call.1} parent=11 // pred_check_branch
          %105 = sbr.rel (%p103) target = $region16
        $region15: #{tpu_custom_call.1} parent=11 // pred_region
          %s107 = ssub.s32 128, 128
          %108 = vsyncadd [#allocation6], %s107
          %s110 = sshll.u32 [#allocation5], 4
          %s111 = int_to_ptr.vmem [resolvable:$true] %s110
          %113 = dma.hbm_to_vmem [thread:$0]  %s1, 128, %s111, [#allocation6]
        $region16: #{tpu_custom_call.1} parent=11 // pred_fallthru
          _
      $region12: #{tpu_custom_call.1} parent=5 // pred_fallthru
        _
      %p114 = scmp.lt.s32.totalorder %s15, 2
      // Predicated region
      $region17: #{tpu_custom_call.1} parent=5 // pred_check
        %p115 = pneg %p114
      $region18: #{tpu_custom_call.1} parent=5 // pred_check_branch
        %117 = sbr.rel (%p115) target = $region20
      $region19: #{tpu_custom_call.1} parent=5 // pred_region
        // Predicated region
        $region21: #{tpu_custom_call.1} parent=19 // pred_check
          %p118 = pneg %p35
        $region22: #{tpu_custom_call.1} parent=19 // pred_check_branch
          %120 = sbr.rel (%p118) target = $region24
        $region23: #{tpu_custom_call.1} parent=19 // pred_region
          %s121 = sand.u32 %s25, 1
          %s122 = scalar_lea.sflag [#allocation3], %s121
          %s123 = sand.u32 %s25, 1
          %s124 = smul.addr %s123, 3
          %s125 = scalar_lea.vmem [#allocation2], %s124
          %s127 = ssub.s32 48, 48
          %128 = vsyncadd %s122, %s127
          %s129 = smul.addr %s15, 3
          %s130 = smul.addr %s129, 16
          %s131 = scalar_lea.hbm %s0, %s130
          %s133 = sshll.u32 %s125, 4
          %s134 = int_to_ptr.vmem [resolvable:$true] %s133
          %136 = dma.hbm_to_vmem [thread:$0]  %s131, 48, %s134, %s122
        $region24: #{tpu_custom_call.1} parent=19 // pred_fallthru
          _
      $region20: #{tpu_custom_call.1} parent=5 // pred_fallthru
        _
      %p137 = scmp.le.s32.totalorder 1, %s15
      %p138 = scmp.lt.s32.totalorder %s15, 3
      %p139 = pnand %p137, %p138
      %p140 = pneg %p139
      // Predicated region
      $region25: #{tpu_custom_call.1} parent=5 // pred_check
        _
      $region26: #{tpu_custom_call.1} parent=5 // pred_check_branch
        %142 = sbr.rel (%p139) target = $region28
      $region27: #{tpu_custom_call.1} parent=5 // pred_region
        %s143 = ssub.s32 %s15, 1
        %s144 = sand.u32 %s28, 1
        %s145 = scalar_lea.sflag [#allocation3], %s144
        %s146 = sand.u32 %s28, 1
        %s147 = smul.addr %s146, 3
        %s148 = scalar_lea.vmem [#allocation2], %s147
        // Predicated region
        $region29: #{tpu_custom_call.1} parent=27 // pred_check
          %p149 = pneg %p41
        $region30: #{tpu_custom_call.1} parent=27 // pred_check_branch
          %151 = sbr.rel (%p149) target = $region32
        $region31: #{tpu_custom_call.1} parent=27 // pred_region
          %152 = dma.done %s145, 48
        $region32: #{tpu_custom_call.1} parent=27 // pred_fallthru
          _
        // Predicated region
        $region33: #{tpu_custom_call.1} parent=27 // pred_check
          %p153 = pneg %p62
        $region34: #{tpu_custom_call.1} parent=27 // pred_check_branch
          %155 = sbr.rel (%p153) target = $region36
        $region35: #{tpu_custom_call.1} parent=27 // pred_region
          %156 = dma.done [#allocation6], 128
        $region36: #{tpu_custom_call.1} parent=27 // pred_fallthru
          _
        %s157 = sand.u32 %s28, 1
        %s158 = scalar_lea.sflag [#allocation3], %s157
        %s159 = sand.u32 %s28, 1
        %s160 = smul.addr %s159, 3
        %s161 = scalar_lea.vmem [#allocation2], %s160
        %p162 = pneg %p41
        %p163 = pneg %p38
        %p164 = pneg %p62
        %p165 = pneg %p59
        %p166 = pneg %p88
        %p167 = pneg %p85
        %s168 = sand.u32 %s75, 1
        %s169 = scalar_lea.sflag [#allocation4], %s168
        %s170 = sand.u32 %s75, 1
        %s171 = smul.addr %s170, 24
        %s172 = scalar_lea.vmem [#allocation7], %s171
        %v173 = vld [vmem:[%s148] sm:$0x7]
        %v175 = vlaneseq
        %v176 = vshrl.u32 %v175, 7
        %v177 = vsub.s32 0, %v176
        %v178 = vrot.slane %v173, %v177
        %v179 = vlaneseq
        %v180 = vshrl.u32 %v179, 7
        %v181 = vsub.s32 1, %v180
        %v182 = vrot.slane %v173, %v181
        %v183 = vlaneseq
        %v184 = vshrl.u32 %v183, 7
        %v185 = vsub.s32 2, %v184
        %v186 = vrot.slane %v173, %v185
        %v190 = vld [vmem:[#allocation5] sm:$0xff]
        %191 = vrot.lane.b32.xlu0 %v178, 1
        %v192 = vpop.permute.xlu0 %191
        %193 = vrot.lane.b32.xlu0 %v182, 1
        %v194 = vpop.permute.xlu0 %193
        %195 = vrot.lane.b32.xlu0 %v186, 1
        %v196 = vpop.permute.xlu0 %195
        %v197 = vlaneseq
        %v198 = vand.u32 %v197, 127
        %vm199 = vcmp.lt.s32.totalorder %v198, 1
        %v200 = vsel %vm199, %v194, %v196
        %v201 = vsel %vm199, %v192, %v194
        %v202 = vsel %vm199, %v196, %v192
        %203 = vrot.lane.b32.xlu0 %v178, 127
        %v204 = vpop.permute.xlu0 %203
        %205 = vrot.lane.b32.xlu0 %v182, 127
        %v206 = vpop.permute.xlu0 %205
        %207 = vrot.lane.b32.xlu0 %v186, 127
        %v208 = vpop.permute.xlu0 %207
        %vm209 = vcmp.lt.s32.totalorder %v198, 127
        %v210 = vsel %vm209, %v206, %v208
        %v211 = vsel %vm209, %v204, %v206
        %v212 = vsel %vm209, %v208, %v204
        %214 = vset.pattern.permute.xlu0 0
        %215 = vperm.xlu0 %214, %v190
        %v216 = vpop.permute.xlu0 %215
        %v218 = vmul.f32 %v216, %v202
        %v219 = vmul.f32 %v216, %v201
        %v220 = vmul.f32 %v216, %v200
        %221 = vset.pattern.permute.xlu0 1
        %222 = vperm.xlu0 %221, %v190
        %v223 = vpop.permute.xlu0 %222
        %v225 = vmul.f32 %v223, %v178
        %v226 = vmul.f32 %v223, %v182
        %v227 = vmul.f32 %v223, %v186
        %v228 = vadd.f32 %v218, %v225
        %v229 = vadd.f32 %v219, %v226
        %v230 = vadd.f32 %v220, %v227
        %231 = vset.pattern.permute.xlu0 2
        %232 = vperm.xlu0 %231, %v190
        %v233 = vpop.permute.xlu0 %232
        %v235 = vmul.f32 %v233, %v211
        %v236 = vmul.f32 %v233, %v210
        %v237 = vmul.f32 %v233, %v212
        %v238 = vadd.f32 %v228, %v235
        %v239 = vadd.f32 %v229, %v236
        %v240 = vadd.f32 %v230, %v237
        %241 = vset.pattern.permute.xlu0 3
        %242 = vperm.xlu0 %241, %v190
        %v243 = vpop.permute.xlu0 %242
        %v245 = vmul.f32 %v243, %v202
        %v246 = vmul.f32 %v243, %v201
        %v247 = vmul.f32 %v243, %v200
        %248 = vset.pattern.permute.xlu0 4
        %249 = vperm.xlu0 %248, %v190
        %v250 = vpop.permute.xlu0 %249
        %v252 = vmul.f32 %v250, %v178
        %v253 = vmul.f32 %v250, %v182
        %v254 = vmul.f32 %v250, %v186
        %v255 = vadd.f32 %v245, %v252
        %v256 = vadd.f32 %v246, %v253
        %v257 = vadd.f32 %v247, %v254
        %258 = vset.pattern.permute.xlu0 5
        %259 = vperm.xlu0 %258, %v190
        %v260 = vpop.permute.xlu0 %259
        %v262 = vmul.f32 %v260, %v211
        %v263 = vmul.f32 %v260, %v210
        %v264 = vmul.f32 %v260, %v212
        %v265 = vadd.f32 %v255, %v262
        %v266 = vadd.f32 %v256, %v263
        %v267 = vadd.f32 %v257, %v264
        %268 = vset.pattern.permute.xlu0 6
        %269 = vperm.xlu0 %268, %v190
        %v270 = vpop.permute.xlu0 %269
        %v272 = vmul.f32 %v270, %v202
        %v273 = vmul.f32 %v270, %v201
        %v274 = vmul.f32 %v270, %v200
        %275 = vset.pattern.permute.xlu0 7
        %276 = vperm.xlu0 %275, %v190
        %v277 = vpop.permute.xlu0 %276
        %v279 = vmul.f32 %v277, %v178
        %v280 = vmul.f32 %v277, %v182
        %v281 = vmul.f32 %v277, %v186
        %v282 = vadd.f32 %v272, %v279
        %v283 = vadd.f32 %v273, %v280
        %v284 = vadd.f32 %v274, %v281
        %285 = vset.pattern.permute.xlu0 8
        %286 = vperm.xlu0 %285, %v190
        %v287 = vpop.permute.xlu0 %286
        %v289 = vmul.f32 %v287, %v211
        %v290 = vmul.f32 %v287, %v210
        %v291 = vmul.f32 %v287, %v212
        %v292 = vadd.f32 %v282, %v289
        %v293 = vadd.f32 %v283, %v290
        %v294 = vadd.f32 %v284, %v291
        %295 = vrot.lane.b32.xlu0 %v238, 18
        %v296 = vpop.permute.xlu0 %295
        %297 = vrot.lane.b32.xlu0 %v239, 18
        %v298 = vpop.permute.xlu0 %297
        %299 = vrot.lane.b32.xlu0 %v240, 18
        %v300 = vpop.permute.xlu0 %299
        %vm301 = vcmp.lt.s32.totalorder %v198, 18
        %v302 = vsel %vm301, %v298, %v300
        %v303 = vsel %vm301, %v296, %v298
        %v304 = vsel %vm301, %v300, %v296
        %v305 = vadd.f32 %v304, %v265
        %v306 = vadd.f32 %v303, %v266
        %v307 = vadd.f32 %v302, %v267
        %308 = vrot.lane.b32.xlu0 %v292, 110
        %v309 = vpop.permute.xlu0 %308
        %310 = vrot.lane.b32.xlu0 %v293, 110
        %v311 = vpop.permute.xlu0 %310
        %312 = vrot.lane.b32.xlu0 %v294, 110
        %v313 = vpop.permute.xlu0 %312
        %vm314 = vcmp.lt.s32.totalorder %v198, 110
        %v315 = vsel %vm314, %v311, %v313
        %v316 = vsel %vm314, %v309, %v311
        %v317 = vsel %vm314, %v313, %v309
        %v318 = vadd.f32 %v305, %v316
        %v319 = vadd.f32 %v306, %v315
        %v320 = vadd.f32 %v307, %v317
        %321 = vset.pattern.permute.xlu0 9
        %322 = vperm.xlu0 %321, %v190
        %v323 = vpop.permute.xlu0 %322
        %v325 = vadd.f32 %v318, %v323
        %v326 = vadd.f32 %v319, %v323
        %v327 = vadd.f32 %v320, %v323
        %v328 = vmax.f32 %v325, 0.0
        %v329 = vmax.f32 %v326, 0.0
        %v330 = vmax.f32 %v327, 0.0
        %331 = vst [vmem:[%s172] sm:$0xff] %v328
        %332 = vst [vmem:[%s172 + $0x8] sm:$0xff] %v329
        %333 = vst [vmem:[%s172 + $0x10] sm:$0xff] %v330
        %s334 = sand.u32 %s75, 1
        %s335 = scalar_lea.sflag [#allocation4], %s334
        %s336 = sand.u32 %s75, 1
        %s337 = smul.addr %s336, 24
        %s338 = scalar_lea.vmem [#allocation7], %s337
        // Predicated region
        $region37: #{tpu_custom_call.1} parent=27 // pred_check
          %p339 = pneg %p85
        $region38: #{tpu_custom_call.1} parent=27 // pred_check_branch
          %341 = sbr.rel (%p339) target = $region40
        $region39: #{tpu_custom_call.1} parent=27 // pred_region
          %s343 = ssub.s32 384, 384
          %344 = vsyncadd %s335, %s343
          %s345 = smul.addr %s20, 3
          %s346 = smul.addr %s345, 128
          %s347 = scalar_lea.hbm %s2, %s346
          %s349 = sshll.u32 %s338, 4
          %s350 = int_to_ptr.vmem [resolvable:$true] %s349
          %352 = dma.vmem_to_hbm [thread:$0]  %s350, 384, %s347, %s335
        $region40: #{tpu_custom_call.1} parent=27 // pred_fallthru
          _
      $region28: #{tpu_custom_call.1} parent=5 // pred_fallthru
        _
      %p353 = scmp.le.s32.totalorder 2, %s15
      // Predicated region
      $region41: #{tpu_custom_call.1} parent=5 // pred_check
        %p354 = pneg %p353
      $region42: #{tpu_custom_call.1} parent=5 // pred_check_branch
        %356 = sbr.rel (%p354) target = $region44
      $region43: #{tpu_custom_call.1} parent=5 // pred_region
        %s357 = ssub.s32 %s15, 2
        // Predicated region
        $region45: #{tpu_custom_call.1} parent=43 // pred_check
          %p358 = pneg %p91
        $region46: #{tpu_custom_call.1} parent=43 // pred_check_branch
          %360 = sbr.rel (%p358) target = $region48
        $region47: #{tpu_custom_call.1} parent=43 // pred_region
          %s361 = sand.u32 %s76, 1
          %s362 = scalar_lea.sflag [#allocation4], %s361
          %s363 = sand.u32 %s76, 1
          %s364 = smul.addr %s363, 24
          %s365 = scalar_lea.vmem [#allocation7], %s364
          %366 = dma.done %s362, 384
        $region48: #{tpu_custom_call.1} parent=43 // pred_fallthru
          _
      $region44: #{tpu_custom_call.1} parent=5 // pred_fallthru
        _
    $region6: #{tpu_custom_call.1} parent=1 // loop_footer
      %s19 = sadd.s32 1, %s15
    $region7: #{tpu_custom_call.1} parent=1 // loop_footer_branch
      %14 = sbr.rel target = $region3
    $region8: #{tpu_custom_call.1} parent=1 // loop_exit
      _
    %367 = vsyncpa [#allocation3], 1
    %s368 = scalar_lea.sflag [#allocation3], 1
    %369 = vsyncpa %s368, 1
    %370 = vsyncpa [#allocation6], 1
    %371 = vsyncpa [#allocation4], 1
    %s372 = scalar_lea.sflag [#allocation4], 1
    %373 = vsyncpa %s372, 1

</llo_original>
